<compile_context>
chip_gen: v7x
topology: tpu7x:2x2x1
jax: 0.10.0
libtpu: 0.0.40
codegen_flags: <defaults>
</compile_context>

<pallas_src>
import jax
import jax.numpy as jnp
from jax.experimental import pallas as pl
from jax.experimental.pallas import tpu as pltpu

LANE = 128          # lane width (last-dim alignment for weights / activations)
BF16_SUBLANE = 16   # bf16 packs two rows per sublane -> round batch tiles to 16


def _round_up(x, m):
    return ((x + m - 1) // m) * m


def _nbytes(a):
    return a.size * jnp.dtype(a.dtype).itemsize


def mlp_kernel(x_ref,
               w1_ref, b1_ref,
               w2_ref, b2_ref,
               w3_ref, b3_ref,
               w4_ref, b4_ref,
               o_ref):
    cdt = w1_ref.dtype                       # MXU compute dtype (bf16)
    x = x_ref[...].astype(cdt)               # f32 HBM tile, cast in-register

    # fc1 + ReLU (bf16 MXU inputs, f32 accumulate, f32 elementwise)
    h = jnp.dot(x, w1_ref[...], preferred_element_type=jnp.float32) + b1_ref[...]
    h = jnp.maximum(h, 0.0)

    # fc2 + ReLU
    h = jnp.dot(h.astype(cdt), w2_ref[...], preferred_element_type=jnp.float32) + b2_ref[...]
    h = jnp.maximum(h, 0.0)

    # fc3 + ReLU
    h = jnp.dot(h.astype(cdt), w3_ref[...], preferred_element_type=jnp.float32) + b3_ref[...]
    h = jnp.maximum(h, 0.0)

    # fc4 + Sigmoid (exp + approx reciprocal both issue on the otherwise-idle EUP slot)
    h = jnp.dot(h.astype(cdt), w4_ref[...], preferred_element_type=jnp.float32) + b4_ref[...]
    sig = pl.reciprocal(1.0 + jnp.exp(-h), approx=True)
    o_ref[...] = sig.astype(o_ref.dtype)     # bf16 lane-dense writeback


def prepare_params(params, compute_dtype=jnp.bfloat16):
    """Pad weight dims to LANE multiples (zeros) and cast weights to bf16.

    fc1's input (K) dim is left UNPADDED so it matches the raw, un-padded x that
    the kernel reads directly from HBM.  All output (N) dims — and therefore the
    K dims of the following layers — are zero-padded to multiples of 128, which
    is exact: padded activation columns are zero (zero weights + zero bias) and
    padded output columns are sliced off by the wrapper.
    """
    padded = {}
    for idx in range(1, 5):
        w = params[f"w{idx}"]
        b = params[f"b{idx}"]
        din, dout = w.shape
        din_p = din if idx == 1 else _round_up(din, LANE)
        dout_p = _round_up(dout, LANE)
        padded[f"w{idx}"] = jnp.pad(
            w, ((0, din_p - din), (0, dout_p - dout))).astype(compute_dtype)
        padded[f"b{idx}"] = jnp.pad(
            b, ((0, 0), (0, dout_p - dout))).astype(jnp.float32)
    return padded


def mlp_forward(x, padded_params, output_size, *, tile_b=None,
                out_dtype=jnp.bfloat16):
    """x: [B, input_size] f32 (unpadded). padded_params: output of prepare_params."""
    B, din = x.shape
    assert padded_params["w1"].shape[0] == din, "w1 K-dim must match raw input size"
    dout_p = padded_params["w4"].shape[1]

    # Batch tile: aim for >= 4 grid steps (megacore sharding + pipelining) while
    # capping the tile for VMEM.  Raise the 1024 cap toward 2048 on v5e/v6e for
    # very large batches if profiling shows per-step overhead dominating.
    if tile_b is None:
        tile_b = min(1024, _round_up(pl.cdiv(B, 4), BF16_SUBLANE))
    tile_b = max(BF16_SUBLANE, _round_up(tile_b, BF16_SUBLANE))

    # Ragged batch handled by the grid: the last partial tile's store is masked
    # by Pallas (rows are independent, so garbage OOB rows cannot leak).
    grid = (pl.cdiv(B, tile_b),)

    def x_map(i):
        return (i, 0)

    def const_map(i):          # grid-invariant: weights/biases stay VMEM-resident
        return (0, 0)

    # x BlockSpec last dim == full array dim (din) -> legal without 128-padding.
    in_specs = [pl.BlockSpec((tile_b, din), x_map)]
    for idx in range(1, 5):
        in_specs.append(pl.BlockSpec(padded_params[f"w{idx}"].shape, const_map))
        in_specs.append(pl.BlockSpec(padded_params[f"b{idx}"].shape, const_map))
    out_spec = pl.BlockSpec((tile_b, dout_p), x_map)   # lane-dense (multiple of 128)

    # Scoped-VMEM budget: double-buffered x/out tiles + (double-buffered)
    # resident weights + live f32 intermediates.  Only raise the limit when the
    # defaults (16 MiB v5e / 32 MiB v6e,v7x) would be exceeded.
    max_w = max([din] + [padded_params[f"w{i}"].shape[1] for i in range(1, 5)])
    param_bytes = sum(_nbytes(v) for v in padded_params.values())
    est = (2 * (tile_b * din * 4 + tile_b * dout_p * jnp.dtype(out_dtype).itemsize)
           + 2 * param_bytes
           + 3 * tile_b * max_w * 4)
    vmem_limit = None
    if est > (12 << 20):
        # TODO(synk): cap lower (~56 MiB) on v7x, or stream weight N-tiles.
        vmem_limit = min(96 << 20, int(1.5 * est))

    out = pl.pallas_call(
        mlp_kernel,
        out_shape=jax.ShapeDtypeStruct((B, dout_p), out_dtype),
        grid_spec=pltpu.PrefetchScalarGridSpec(
            num_scalar_prefetch=0,
            grid=grid,
            in_specs=in_specs,
            out_specs=out_spec,
        ),
        compiler_params=pltpu.CompilerParams(
            dimension_semantics=("parallel",),   # batch axis shards across TCs on v7x
            vmem_limit_bytes=vmem_limit,
        ),
    )(x,
      padded_params["w1"], padded_params["b1"],
      padded_params["w2"], padded_params["b2"],
      padded_params["w3"], padded_params["b3"],
      padded_params["w4"], padded_params["b4"])

    # Tiny [B, output_size] slice + cast back to f32 (caller-facing dtype).
    return out[:, :output_size].astype(jnp.float32)


def init_params(key, input_size, h1, h2, h3, output_size):
    """Deterministic Kaiming-uniform-ish init (matching nn.Linear shapes)."""
    dims = [(input_size, h1), (h1, h2), (h2, h3), (h3, output_size)]
    params = {}
    for idx, (din, dout) in enumerate(dims, start=1):
        key, kw, kb = jax.random.split(key, 3)
        bound = 1.0 / jnp.sqrt(din)
        params[f"w{idx}"] = jax.random.uniform(
            kw, (din, dout), jnp.float32, -bound, bound)
        params[f"b{idx}"] = jax.random.uniform(
            kb, (1, dout), jnp.float32, -bound, bound)
    return params


def mlp_reference(x, params, compute_dtype=jnp.bfloat16):
    """Pure-JAX reference mirroring the kernel's bf16-matmul / f32-accumulate math."""
    def dense(h, w, b):
        return jnp.dot(h.astype(compute_dtype), w.astype(compute_dtype),
                       preferred_element_type=jnp.float32) + b
    h = jnp.maximum(dense(x, params["w1"], params["b1"]), 0.0)
    h = jnp.maximum(dense(h, params["w2"], params["b2"]), 0.0)
    h = jnp.maximum(dense(h, params["w3"], params["b3"]), 0.0)
    return jax.nn.sigmoid(dense(h, params["w4"], params["b4"]))


if __name__ == "__main__":
    key = jax.random.PRNGKey(0)

    # Small demo shapes; batch=200 exercises the ragged last tile (auto tile_b=64
    # -> grid of 4 parallel steps, last tile has 8 valid rows).
    batch = 200
    input_size, h1, h2, h3, output_size = 32, 64, 64, 32, 16

    key, kx = jax.random.split(key)
    x = jax.random.normal(kx, (batch, input_size), jnp.float32)
    params = init_params(key, input_size, h1, h2, h3, output_size)

    padded_params = prepare_params(params)
    out = mlp_forward(x, padded_params, output_size)
    out = jax.block_until_ready(out)

    ref = mlp_reference(x, params)
    assert out.shape == (batch, output_size)
    # Tolerance covers the bf16 output writeback + the approximate (EUP)
    # reciprocal in the final sigmoid.
    err = float(jnp.max(jnp.abs(out - ref)))
    assert err < 1e-2, f"mismatch vs reference: max abs err {err}"

    print("KERNEL_OK")
</pallas_src>

<mosaic_0001>
module attributes {stable_mosaic.version = 11 : i64} {
  func.func @mlp_kernel(%arg0: i32, %arg1: memref<64x32xf32, #tpu.memory_space<vmem>>, %arg2: memref<32x128xbf16, #tpu.memory_space<vmem>>, %arg3: memref<1x128xf32, #tpu.memory_space<vmem>>, %arg4: memref<128x128xbf16, #tpu.memory_space<vmem>>, %arg5: memref<1x128xf32, #tpu.memory_space<vmem>>, %arg6: memref<128x128xbf16, #tpu.memory_space<vmem>>, %arg7: memref<1x128xf32, #tpu.memory_space<vmem>>, %arg8: memref<128x128xbf16, #tpu.memory_space<vmem>>, %arg9: memref<1x128xf32, #tpu.memory_space<vmem>>, %arg10: memref<64x128xbf16, #tpu.memory_space<vmem>>) attributes {dimension_semantics = [#tpu.dimension_semantics<parallel>], iteration_bounds = array<i64: 4>, scalar_prefetch = 0 : i64, scratch_operands = 0 : i64, tpu.core_type = #tpu.core_type<tc>, window_params = [{transform_indices = @transform_0, window_bounds = array<i64: 64, 32>}, {pipeline_mode = #tpu.pipeline_mode<synchronous>, transform_indices = @transform_1, window_bounds = array<i64: 32, 128>}, {pipeline_mode = #tpu.pipeline_mode<synchronous>, transform_indices = @transform_2, window_bounds = array<i64: 1, 128>}, {pipeline_mode = #tpu.pipeline_mode<synchronous>, transform_indices = @transform_3, window_bounds = array<i64: 128, 128>}, {pipeline_mode = #tpu.pipeline_mode<synchronous>, transform_indices = @transform_4, window_bounds = array<i64: 1, 128>}, {pipeline_mode = #tpu.pipeline_mode<synchronous>, transform_indices = @transform_5, window_bounds = array<i64: 128, 128>}, {pipeline_mode = #tpu.pipeline_mode<synchronous>, transform_indices = @transform_6, window_bounds = array<i64: 1, 128>}, {pipeline_mode = #tpu.pipeline_mode<synchronous>, transform_indices = @transform_7, window_bounds = array<i64: 128, 128>}, {pipeline_mode = #tpu.pipeline_mode<synchronous>, transform_indices = @transform_8, window_bounds = array<i64: 1, 128>}, {transform_indices = @transform_9, window_bounds = array<i64: 64, 128>}]} {
    %c0 = arith.constant 0 : index
    %c0_0 = arith.constant 0 : index
    %0 = vector.load %arg1[%c0, %c0_0] : memref<64x32xf32, #tpu.memory_space<vmem>>, vector<64x32xf32>
    %1 = arith.truncf %0 : vector<64x32xf32> to vector<64x32xbf16>
    %c0_1 = arith.constant 0 : index
    %c0_2 = arith.constant 0 : index
    %2 = vector.load %arg2[%c0_1, %c0_2] : memref<32x128xbf16, #tpu.memory_space<vmem>>, vector<32x128xbf16>
    %cst = arith.constant dense<0.000000e+00> : vector<64x128xf32>
    %3 = tpu.matmul %1, %2, %cst {dimension_numbers = #tpu.dot_dimension_numbers<[1], [0], [0], [1], [0, 0, 1, 1], [], []>} : vector<64x32xbf16>, vector<32x128xbf16>, vector<64x128xf32> -> vector<64x128xf32>
    %c0_3 = arith.constant 0 : index
    %c0_4 = arith.constant 0 : index
    %4 = vector.load %arg3[%c0_3, %c0_4] : memref<1x128xf32, #tpu.memory_space<vmem>>, vector<1x128xf32>
    %5 = vector.broadcast %4 : vector<1x128xf32> to vector<64x128xf32>
    %6 = arith.addf %3, %5 : vector<64x128xf32>
    %cst_5 = arith.constant 0.000000e+00 : f32
    %7 = vector.broadcast %cst_5 : f32 to vector<64x128xf32>
    %8 = arith.maximumf %6, %7 : vector<64x128xf32>
    %9 = arith.truncf %8 : vector<64x128xf32> to vector<64x128xbf16>
    %c0_6 = arith.constant 0 : index
    %c0_7 = arith.constant 0 : index
    %10 = vector.load %arg4[%c0_6, %c0_7] : memref<128x128xbf16, #tpu.memory_space<vmem>>, vector<128x128xbf16>
    %cst_8 = arith.constant dense<0.000000e+00> : vector<64x128xf32>
    %11 = tpu.matmul %9, %10, %cst_8 {dimension_numbers = #tpu.dot_dimension_numbers<[1], [0], [0], [1], [0, 0, 1, 1], [], []>} : vector<64x128xbf16>, vector<128x128xbf16>, vector<64x128xf32> -> vector<64x128xf32>
    %c0_9 = arith.constant 0 : index
    %c0_10 = arith.constant 0 : index
    %12 = vector.load %arg5[%c0_9, %c0_10] : memref<1x128xf32, #tpu.memory_space<vmem>>, vector<1x128xf32>
    %13 = vector.broadcast %12 : vector<1x128xf32> to vector<64x128xf32>
    %14 = arith.addf %11, %13 : vector<64x128xf32>
    %cst_11 = arith.constant 0.000000e+00 : f32
    %15 = vector.broadcast %cst_11 : f32 to vector<64x128xf32>
    %16 = arith.maximumf %14, %15 : vector<64x128xf32>
    %17 = arith.truncf %16 : vector<64x128xf32> to vector<64x128xbf16>
    %c0_12 = arith.constant 0 : index
    %c0_13 = arith.constant 0 : index
    %18 = vector.load %arg6[%c0_12, %c0_13] : memref<128x128xbf16, #tpu.memory_space<vmem>>, vector<128x128xbf16>
    %cst_14 = arith.constant dense<0.000000e+00> : vector<64x128xf32>
    %19 = tpu.matmul %17, %18, %cst_14 {dimension_numbers = #tpu.dot_dimension_numbers<[1], [0], [0], [1], [0, 0, 1, 1], [], []>} : vector<64x128xbf16>, vector<128x128xbf16>, vector<64x128xf32> -> vector<64x128xf32>
    %c0_15 = arith.constant 0 : index
    %c0_16 = arith.constant 0 : index
    %20 = vector.load %arg7[%c0_15, %c0_16] : memref<1x128xf32, #tpu.memory_space<vmem>>, vector<1x128xf32>
    %21 = vector.broadcast %20 : vector<1x128xf32> to vector<64x128xf32>
    %22 = arith.addf %19, %21 : vector<64x128xf32>
    %cst_17 = arith.constant 0.000000e+00 : f32
    %23 = vector.broadcast %cst_17 : f32 to vector<64x128xf32>
    %24 = arith.maximumf %22, %23 : vector<64x128xf32>
    %25 = arith.truncf %24 : vector<64x128xf32> to vector<64x128xbf16>
    %c0_18 = arith.constant 0 : index
    %c0_19 = arith.constant 0 : index
    %26 = vector.load %arg8[%c0_18, %c0_19] : memref<128x128xbf16, #tpu.memory_space<vmem>>, vector<128x128xbf16>
    %cst_20 = arith.constant dense<0.000000e+00> : vector<64x128xf32>
    %27 = tpu.matmul %25, %26, %cst_20 {dimension_numbers = #tpu.dot_dimension_numbers<[1], [0], [0], [1], [0, 0, 1, 1], [], []>} : vector<64x128xbf16>, vector<128x128xbf16>, vector<64x128xf32> -> vector<64x128xf32>
    %c0_21 = arith.constant 0 : index
    %c0_22 = arith.constant 0 : index
    %28 = vector.load %arg9[%c0_21, %c0_22] : memref<1x128xf32, #tpu.memory_space<vmem>>, vector<1x128xf32>
    %29 = vector.broadcast %28 : vector<1x128xf32> to vector<64x128xf32>
    %30 = arith.addf %27, %29 : vector<64x128xf32>
    %cst_23 = arith.constant 0.000000e+00 : f32
    %31 = vector.broadcast %cst_23 : f32 to vector<64x128xf32>
    %32 = arith.subf %31, %30 : vector<64x128xf32>
    %33 = math.exp %32 : vector<64x128xf32>
    %cst_24 = arith.constant 1.000000e+00 : f32
    %34 = vector.broadcast %cst_24 : f32 to vector<64x128xf32>
    %35 = arith.addf %34, %33 : vector<64x128xf32>
    %36 = tpu.reciprocal %35 {approx = true} : vector<64x128xf32> -> vector<64x128xf32>
    %37 = arith.truncf %36 : vector<64x128xf32> to vector<64x128xbf16>
    %c0_25 = arith.constant 0 : index
    %c0_26 = arith.constant 0 : index
    %38 = vector.load %arg10[%c0_25, %c0_26] : memref<64x128xbf16, #tpu.memory_space<vmem>>, vector<64x128xbf16>
    tpu.vector_store %arg10[%c0_25, %c0_26], %37 {strides = array<i32>} : memref<64x128xbf16, #tpu.memory_space<vmem>>, vector<64x128xbf16>,
    return
  }
  func.func @transform_0(%arg0: i32) -> (i32, i32) {
    %c0_i32 = arith.constant 0 : i32
    %c0_i32_0 = arith.constant 0 : i32
    return %arg0, %c0_i32 : i32, i32
  }
  func.func @transform_1(%arg0: i32) -> (i32, i32) {
    %c0_i32 = arith.constant 0 : i32
    %c0_i32_0 = arith.constant 0 : i32
    %c0_i32_1 = arith.constant 0 : i32
    return %c0_i32, %c0_i32_0 : i32, i32
  }
  func.func @transform_2(%arg0: i32) -> (i32, i32) {
    %c0_i32 = arith.constant 0 : i32
    %c0_i32_0 = arith.constant 0 : i32
    %c0_i32_1 = arith.constant 0 : i32
    return %c0_i32, %c0_i32_0 : i32, i32
  }
  func.func @transform_3(%arg0: i32) -> (i32, i32) {
    %c0_i32 = arith.constant 0 : i32
    %c0_i32_0 = arith.constant 0 : i32
    %c0_i32_1 = arith.constant 0 : i32
    return %c0_i32, %c0_i32_0 : i32, i32
  }
  func.func @transform_4(%arg0: i32) -> (i32, i32) {
    %c0_i32 = arith.constant 0 : i32
    %c0_i32_0 = arith.constant 0 : i32
    %c0_i32_1 = arith.constant 0 : i32
    return %c0_i32, %c0_i32_0 : i32, i32
  }
  func.func @transform_5(%arg0: i32) -> (i32, i32) {
    %c0_i32 = arith.constant 0 : i32
    %c0_i32_0 = arith.constant 0 : i32
    %c0_i32_1 = arith.constant 0 : i32
    return %c0_i32, %c0_i32_0 : i32, i32
  }
  func.func @transform_6(%arg0: i32) -> (i32, i32) {
    %c0_i32 = arith.constant 0 : i32
    %c0_i32_0 = arith.constant 0 : i32
    %c0_i32_1 = arith.constant 0 : i32
    return %c0_i32, %c0_i32_0 : i32, i32
  }
  func.func @transform_7(%arg0: i32) -> (i32, i32) {
    %c0_i32 = arith.constant 0 : i32
    %c0_i32_0 = arith.constant 0 : i32
    %c0_i32_1 = arith.constant 0 : i32
    return %c0_i32, %c0_i32_0 : i32, i32
  }
  func.func @transform_8(%arg0: i32) -> (i32, i32) {
    %c0_i32 = arith.constant 0 : i32
    %c0_i32_0 = arith.constant 0 : i32
    %c0_i32_1 = arith.constant 0 : i32
    return %c0_i32, %c0_i32_0 : i32, i32
  }
  func.func @transform_9(%arg0: i32) -> (i32, i32) {
    %c0_i32 = arith.constant 0 : i32
    %c0_i32_0 = arith.constant 0 : i32
    return %arg0, %c0_i32 : i32, i32
  }
}

</mosaic_0001>

<llo_original>
// kernel: tpu_custom_call.1
$region0: #{tpu_custom_call.1}
  #allocation0 [shape = 'u32[]', space=smem, size = 0x4, offset = 0x4, fixed_abs, tag = 'smem constant byte address 0x4 - core index']
  #allocation1 [shape = 'u32[144,128]{1,0:T(1,128)}', space=vmem, size = 0x12000, scoped, tag = 'internal scratch']
  %s0 = inlined_call_operand.vmem [shape: f32[200,32], index: 0, kind: input, shape index: {}]
  %s1 = inlined_call_operand.vmem [shape: bf16[32,128], index: 1, kind: input, shape index: {}]
  %s2 = inlined_call_operand.vmem [shape: f32[1,128], index: 2, kind: input, shape index: {}]
  %s3 = inlined_call_operand.vmem [shape: bf16[128,128], index: 3, kind: input, shape index: {}]
  %s4 = inlined_call_operand.vmem [shape: f32[1,128], index: 4, kind: input, shape index: {}]
  %s5 = inlined_call_operand.vmem [shape: bf16[128,128], index: 5, kind: input, shape index: {}]
  %s6 = inlined_call_operand.vmem [shape: f32[1,128], index: 6, kind: input, shape index: {}]
  %s7 = inlined_call_operand.vmem [shape: bf16[128,128], index: 7, kind: input, shape index: {}]
  %s8 = inlined_call_operand.vmem [shape: f32[1,128], index: 8, kind: input, shape index: {}]
  %s9 = inlined_call_operand.hbm [shape: bf16[200,128], index: 9, kind: output, shape index: {}]
  %s10 = sld [smem:[#allocation0]]
  $region69: #{tpu_custom_call.1} parent=0
    _
  %s12 = ssub.s32 1, %s10
  %s13 = scalar_select 0, %s12, %s10
  $region1: #{tpu_custom_call.1} parent=0
    #allocation2 [shape = 'u8[32768]{0}', space=vmem, size = 0x8000, scoped, tag = 'output window, operand 0']
    #allocation3 [shape = 's32[2]{0}', space=sflag, size = 0x8, scoped, tag = 'scoped memory for tpu_custom_call.1']
    %14 = vsyncpa [#allocation3], 0
    %s15 = scalar_lea.sflag [#allocation3], 1
    %16 = vsyncpa %s15, 0
    loop: start=0, step=1, limit=6
    $region2: #{tpu_custom_call.1} parent=1 // loop_pre_header
      _
    $region3: #{tpu_custom_call.1} parent=1 // loop_header
      %s18 = sphi 0, %s22
      %p19 = scmp.ge.s32.totalorder %s18, 6
      %s28 = sphi 0, %s30
      %s31 = sphi 0, %s28
      %s32 = sphi 0, %s31
      %s48 = sphi 0, %s32
      %s52 = sphi 0, %s52
      %s54 = sphi 0, %s52
      %s55 = sphi 0, %s54
      %s69 = sphi 0, %s55
      %s73 = sphi 0, %s73
      %s75 = sphi 0, %s73
      %s76 = sphi 0, %s75
      %s90 = sphi 0, %s76
      %s94 = sphi 0, %s94
      %s96 = sphi 0, %s94
      %s97 = sphi 0, %s96
      %s111 = sphi 0, %s97
      %s115 = sphi 0, %s115
      %s117 = sphi 0, %s115
      %s118 = sphi 0, %s117
      %s132 = sphi 0, %s118
      %s136 = sphi 0, %s136
      %s138 = sphi 0, %s136
      %s139 = sphi 0, %s138
      %s153 = sphi 0, %s139
      %s157 = sphi 0, %s157
      %s159 = sphi 0, %s157
      %s160 = sphi 0, %s159
      %s174 = sphi 0, %s160
      %s178 = sphi 0, %s178
      %s180 = sphi 0, %s178
      %s181 = sphi 0, %s180
      %s195 = sphi 0, %s181
      %s199 = sphi 0, %s199
      %s201 = sphi 0, %s199
      %s202 = sphi 0, %s201
      %s216 = sphi 0, %s202
      %s222 = sphi 0, %s224
      %s225 = sphi 0, %s222
      %s226 = sphi 0, %s225
      %s242 = sphi 0, %s226
    $region4: #{tpu_custom_call.1} parent=1 // loop_header_branch
      %21 = sbr.rel (%p19) target = $region8
    $region5: #{tpu_custom_call.1} parent=1 // loop_body
      %s23 = ssub.s32 %s18, 1
      %s24 = ssub.s32 %s18, 2
      %s25 = sadd.s32 %s18, 1
      %s26 = ssub.s32 %s18, %s25
      %p27 = scmp.eq.s32.totalorder %s26, 0
      %s29 = sadd.s32 %s28, 1
      %s30 = scalar_select %p27, %s28, %s29
      %p33 = pneg %p27
      %p34 = scmp.eq.s32.totalorder %s18, 3
      %p35 = por %p33, %p34
      %p36 = scmp.ne.s32.totalorder %s28, %s31
      %p37 = scmp.eq.s32.totalorder %s18, 0
      %p38 = por %p36, %p37
      %p39 = scmp.ne.s32.totalorder %s28, %s31
      %p40 = scmp.eq.s32.totalorder %s23, 3
      %p41 = por %p39, %p40
      %p42 = scmp.ne.s32.totalorder %s31, %s32
      %p43 = scmp.eq.s32.totalorder %s23, 0
      %p44 = por %p42, %p43
      %p45 = scmp.ne.s32.totalorder %s31, %s32
      %p46 = scmp.eq.s32.totalorder %s24, 3
      %p47 = por %p45, %p46
      %p49 = scmp.ne.s32.totalorder %s32, %s48
      %p50 = scmp.eq.s32.totalorder %s24, 0
      %p51 = por %p49, %p50
      %s53 = sadd.s32 %s52, 1
      %p56 = scmp.eq.s32.totalorder %s18, 3
      %p57 = scmp.ne.s32.totalorder %s52, %s54
      %p58 = scmp.eq.s32.totalorder %s18, 0
      %p59 = por %p57, %p58
      %p60 = scmp.ne.s32.totalorder %s52, %s54
      %p61 = scmp.eq.s32.totalorder %s23, 3
      %p62 = por %p60, %p61
      %p63 = scmp.ne.s32.totalorder %s54, %s55
      %p64 = scmp.eq.s32.totalorder %s23, 0
      %p65 = por %p63, %p64
      %p66 = scmp.ne.s32.totalorder %s54, %s55
      %p67 = scmp.eq.s32.totalorder %s24, 3
      %p68 = por %p66, %p67
      %p70 = scmp.ne.s32.totalorder %s55, %s69
      %p71 = scmp.eq.s32.totalorder %s24, 0
      %p72 = por %p70, %p71
      %s74 = sadd.s32 %s73, 1
      %p77 = scmp.eq.s32.totalorder %s18, 3
      %p78 = scmp.ne.s32.totalorder %s73, %s75
      %p79 = scmp.eq.s32.totalorder %s18, 0
      %p80 = por %p78, %p79
      %p81 = scmp.ne.s32.totalorder %s73, %s75
      %p82 = scmp.eq.s32.totalorder %s23, 3
      %p83 = por %p81, %p82
      %p84 = scmp.ne.s32.totalorder %s75, %s76
      %p85 = scmp.eq.s32.totalorder %s23, 0
      %p86 = por %p84, %p85
      %p87 = scmp.ne.s32.totalorder %s75, %s76
      %p88 = scmp.eq.s32.totalorder %s24, 3
      %p89 = por %p87, %p88
      %p91 = scmp.ne.s32.totalorder %s76, %s90
      %p92 = scmp.eq.s32.totalorder %s24, 0
      %p93 = por %p91, %p92
      %s95 = sadd.s32 %s94, 1
      %p98 = scmp.eq.s32.totalorder %s18, 3
      %p99 = scmp.ne.s32.totalorder %s94, %s96
      %p100 = scmp.eq.s32.totalorder %s18, 0
      %p101 = por %p99, %p100
      %p102 = scmp.ne.s32.totalorder %s94, %s96
      %p103 = scmp.eq.s32.totalorder %s23, 3
      %p104 = por %p102, %p103
      %p105 = scmp.ne.s32.totalorder %s96, %s97
      %p106 = scmp.eq.s32.totalorder %s23, 0
      %p107 = por %p105, %p106
      %p108 = scmp.ne.s32.totalorder %s96, %s97
      %p109 = scmp.eq.s32.totalorder %s24, 3
      %p110 = por %p108, %p109
      %p112 = scmp.ne.s32.totalorder %s97, %s111
      %p113 = scmp.eq.s32.totalorder %s24, 0
      %p114 = por %p112, %p113
      %s116 = sadd.s32 %s115, 1
      %p119 = scmp.eq.s32.totalorder %s18, 3
      %p120 = scmp.ne.s32.totalorder %s115, %s117
      %p121 = scmp.eq.s32.totalorder %s18, 0
      %p122 = por %p120, %p121
      %p123 = scmp.ne.s32.totalorder %s115, %s117
      %p124 = scmp.eq.s32.totalorder %s23, 3
      %p125 = por %p123, %p124
      %p126 = scmp.ne.s32.totalorder %s117, %s118
      %p127 = scmp.eq.s32.totalorder %s23, 0
      %p128 = por %p126, %p127
      %p129 = scmp.ne.s32.totalorder %s117, %s118
      %p130 = scmp.eq.s32.totalorder %s24, 3
      %p131 = por %p129, %p130
      %p133 = scmp.ne.s32.totalorder %s118, %s132
      %p134 = scmp.eq.s32.totalorder %s24, 0
      %p135 = por %p133, %p134
      %s137 = sadd.s32 %s136, 1
      %p140 = scmp.eq.s32.totalorder %s18, 3
      %p141 = scmp.ne.s32.totalorder %s136, %s138
      %p142 = scmp.eq.s32.totalorder %s18, 0
      %p143 = por %p141, %p142
      %p144 = scmp.ne.s32.totalorder %s136, %s138
      %p145 = scmp.eq.s32.totalorder %s23, 3
      %p146 = por %p144, %p145
      %p147 = scmp.ne.s32.totalorder %s138, %s139
      %p148 = scmp.eq.s32.totalorder %s23, 0
      %p149 = por %p147, %p148
      %p150 = scmp.ne.s32.totalorder %s138, %s139
      %p151 = scmp.eq.s32.totalorder %s24, 3
      %p152 = por %p150, %p151
      %p154 = scmp.ne.s32.totalorder %s139, %s153
      %p155 = scmp.eq.s32.totalorder %s24, 0
      %p156 = por %p154, %p155
      %s158 = sadd.s32 %s157, 1
      %p161 = scmp.eq.s32.totalorder %s18, 3
      %p162 = scmp.ne.s32.totalorder %s157, %s159
      %p163 = scmp.eq.s32.totalorder %s18, 0
      %p164 = por %p162, %p163
      %p165 = scmp.ne.s32.totalorder %s157, %s159
      %p166 = scmp.eq.s32.totalorder %s23, 3
      %p167 = por %p165, %p166
      %p168 = scmp.ne.s32.totalorder %s159, %s160
      %p169 = scmp.eq.s32.totalorder %s23, 0
      %p170 = por %p168, %p169
      %p171 = scmp.ne.s32.totalorder %s159, %s160
      %p172 = scmp.eq.s32.totalorder %s24, 3
      %p173 = por %p171, %p172
      %p175 = scmp.ne.s32.totalorder %s160, %s174
      %p176 = scmp.eq.s32.totalorder %s24, 0
      %p177 = por %p175, %p176
      %s179 = sadd.s32 %s178, 1
      %p182 = scmp.eq.s32.totalorder %s18, 3
      %p183 = scmp.ne.s32.totalorder %s178, %s180
      %p184 = scmp.eq.s32.totalorder %s18, 0
      %p185 = por %p183, %p184
      %p186 = scmp.ne.s32.totalorder %s178, %s180
      %p187 = scmp.eq.s32.totalorder %s23, 3
      %p188 = por %p186, %p187
      %p189 = scmp.ne.s32.totalorder %s180, %s181
      %p190 = scmp.eq.s32.totalorder %s23, 0
      %p191 = por %p189, %p190
      %p192 = scmp.ne.s32.totalorder %s180, %s181
      %p193 = scmp.eq.s32.totalorder %s24, 3
      %p194 = por %p192, %p193
      %p196 = scmp.ne.s32.totalorder %s181, %s195
      %p197 = scmp.eq.s32.totalorder %s24, 0
      %p198 = por %p196, %p197
      %s200 = sadd.s32 %s199, 1
      %p203 = scmp.eq.s32.totalorder %s18, 3
      %p204 = scmp.ne.s32.totalorder %s199, %s201
      %p205 = scmp.eq.s32.totalorder %s18, 0
      %p206 = por %p204, %p205
      %p207 = scmp.ne.s32.totalorder %s199, %s201
      %p208 = scmp.eq.s32.totalorder %s23, 3
      %p209 = por %p207, %p208
      %p210 = scmp.ne.s32.totalorder %s201, %s202
      %p211 = scmp.eq.s32.totalorder %s23, 0
      %p212 = por %p210, %p211
      %p213 = scmp.ne.s32.totalorder %s201, %s202
      %p214 = scmp.eq.s32.totalorder %s24, 3
      %p215 = por %p213, %p214
      %p217 = scmp.ne.s32.totalorder %s202, %s216
      %p218 = scmp.eq.s32.totalorder %s24, 0
      %p219 = por %p217, %p218
      %s220 = ssub.s32 %s18, %s25
      %p221 = scmp.eq.s32.totalorder %s220, 0
      %s223 = sadd.s32 %s222, 1
      %s224 = scalar_select %p221, %s222, %s223
      %p227 = pneg %p221
      %p228 = scmp.eq.s32.totalorder %s18, 3
      %p229 = por %p227, %p228
      %p230 = scmp.ne.s32.totalorder %s222, %s225
      %p231 = scmp.eq.s32.totalorder %s18, 0
      %p232 = por %p230, %p231
      %p233 = scmp.ne.s32.totalorder %s222, %s225
      %p234 = scmp.eq.s32.totalorder %s23, 3
      %p235 = por %p233, %p234
      %p236 = scmp.ne.s32.totalorder %s225, %s226
      %p237 = scmp.eq.s32.totalorder %s23, 0
      %p238 = por %p236, %p237
      %p239 = scmp.ne.s32.totalorder %s225, %s226
      %p240 = scmp.eq.s32.totalorder %s24, 3
      %p241 = por %p239, %p240
      %p243 = scmp.ne.s32.totalorder %s226, %s242
      %p244 = scmp.eq.s32.totalorder %s24, 0
      %p245 = por %p243, %p244
      %p246 = scmp.le.s32.totalorder 1, %s18
      %p247 = scmp.lt.s32.totalorder %s18, 5
      %p248 = pnand %p246, %p247
      %p249 = pneg %p248
      // Predicated region
      $region9: #{tpu_custom_call.1} parent=5 // pred_check
        _
      $region10: #{tpu_custom_call.1} parent=5 // pred_check_branch
        %251 = sbr.rel (%p248) target = $region12
      $region11: #{tpu_custom_call.1} parent=5 // pred_region
        %s252 = ssub.s32 %s18, 1
        // Predicated region
        $region13: #{tpu_custom_call.1} parent=11 // pred_check
          %p253 = pneg %p65
        $region14: #{tpu_custom_call.1} parent=11 // pred_check_branch
          %255 = sbr.rel (%p253) target = $region16
        $region15: #{tpu_custom_call.1} parent=11 // pred_region
          _
        $region16: #{tpu_custom_call.1} parent=11 // pred_fallthru
          _
        // Predicated region
        $region17: #{tpu_custom_call.1} parent=11 // pred_check
          %p256 = pneg %p86
        $region18: #{tpu_custom_call.1} parent=11 // pred_check_branch
          %258 = sbr.rel (%p256) target = $region20
        $region19: #{tpu_custom_call.1} parent=11 // pred_region
          _
        $region20: #{tpu_custom_call.1} parent=11 // pred_fallthru
          _
        // Predicated region
        $region21: #{tpu_custom_call.1} parent=11 // pred_check
          %p259 = pneg %p107
        $region22: #{tpu_custom_call.1} parent=11 // pred_check_branch
          %261 = sbr.rel (%p259) target = $region24
        $region23: #{tpu_custom_call.1} parent=11 // pred_region
          _
        $region24: #{tpu_custom_call.1} parent=11 // pred_fallthru
          _
        // Predicated region
        $region25: #{tpu_custom_call.1} parent=11 // pred_check
          %p262 = pneg %p128
        $region26: #{tpu_custom_call.1} parent=11 // pred_check_branch
          %264 = sbr.rel (%p262) target = $region28
        $region27: #{tpu_custom_call.1} parent=11 // pred_region
          _
        $region28: #{tpu_custom_call.1} parent=11 // pred_fallthru
          _
        // Predicated region
        $region29: #{tpu_custom_call.1} parent=11 // pred_check
          %p265 = pneg %p149
        $region30: #{tpu_custom_call.1} parent=11 // pred_check_branch
          %267 = sbr.rel (%p265) target = $region32
        $region31: #{tpu_custom_call.1} parent=11 // pred_region
          _
        $region32: #{tpu_custom_call.1} parent=11 // pred_fallthru
          _
        // Predicated region
        $region33: #{tpu_custom_call.1} parent=11 // pred_check
          %p268 = pneg %p170
        $region34: #{tpu_custom_call.1} parent=11 // pred_check_branch
          %270 = sbr.rel (%p268) target = $region36
        $region35: #{tpu_custom_call.1} parent=11 // pred_region
          _
        $region36: #{tpu_custom_call.1} parent=11 // pred_fallthru
          _
        // Predicated region
        $region37: #{tpu_custom_call.1} parent=11 // pred_check
          %p271 = pneg %p191
        $region38: #{tpu_custom_call.1} parent=11 // pred_check_branch
          %273 = sbr.rel (%p271) target = $region40
        $region39: #{tpu_custom_call.1} parent=11 // pred_region
          _
        $region40: #{tpu_custom_call.1} parent=11 // pred_fallthru
          _
        // Predicated region
        $region41: #{tpu_custom_call.1} parent=11 // pred_check
          %p274 = pneg %p212
        $region42: #{tpu_custom_call.1} parent=11 // pred_check_branch
          %276 = sbr.rel (%p274) target = $region44
        $region43: #{tpu_custom_call.1} parent=11 // pred_region
          _
        $region44: #{tpu_custom_call.1} parent=11 // pred_fallthru
          _
      $region12: #{tpu_custom_call.1} parent=5 // pred_fallthru
        _
      %p277 = scmp.lt.s32.totalorder %s18, 4
      // Predicated region
      $region45: #{tpu_custom_call.1} parent=5 // pred_check
        %p278 = pneg %p277
      $region46: #{tpu_custom_call.1} parent=5 // pred_check_branch
        %280 = sbr.rel (%p278) target = $region48
      $region47: #{tpu_custom_call.1} parent=5 // pred_region
        // Predicated region
        $region49: #{tpu_custom_call.1} parent=47 // pred_check
          %p281 = pneg %p38
        $region50: #{tpu_custom_call.1} parent=47 // pred_check_branch
          %283 = sbr.rel (%p281) target = $region52
        $region51: #{tpu_custom_call.1} parent=47 // pred_region
          %s284 = smul.u32 8, %s18
          %s285 = ssub.s32 25, %s284
          %p286 = scmp.lt.s32.totalorder %s285, 8
          %s287 = scalar_select %p286, %s285, 8
          %s288 = smul.u32 128, %s287
          %p289 = scmp.lt.s32.totalorder %s284, 24
          %s290 = scalar_select %p289, %s284, 24
          %s291 = smul.addr %s290, 8
          %s292 = scalar_lea.vmem %s0, %s291
          %s293 = smul.u32 8, %s18
          %s294 = ssub.s32 25, %s293
          %p295 = scmp.lt.s32.totalorder %s294, 8
          %s296 = scalar_select %p295, %s294, 8
          %s297 = smul.u32 128, %s296
        $region52: #{tpu_custom_call.1} parent=47 // pred_fallthru
          _
      $region48: #{tpu_custom_call.1} parent=5 // pred_fallthru
        _
      %p298 = scmp.le.s32.totalorder 1, %s18
      %p299 = scmp.lt.s32.totalorder %s18, 5
      %p300 = pnand %p298, %p299
      %p301 = pneg %p300
      // Predicated region
      $region53: #{tpu_custom_call.1} parent=5 // pred_check
        _
      $region54: #{tpu_custom_call.1} parent=5 // pred_check_branch
        %303 = sbr.rel (%p300) target = $region56
      $region55: #{tpu_custom_call.1} parent=5 // pred_region
        %s304 = ssub.s32 %s18, 1
        %s305 = smul.u32 8, %s23
        %s306 = ssub.s32 25, %s305
        %p307 = scmp.lt.s32.totalorder %s306, 8
        %s308 = scalar_select %p307, %s306, 8
        %s309 = smul.u32 128, %s308
        %p310 = scmp.lt.s32.totalorder %s305, 24
        %s311 = scalar_select %p310, %s305, 24
        %s312 = smul.addr %s311, 8
        %s313 = scalar_lea.vmem %s0, %s312
        %p314 = pneg %p44
        %p315 = pneg %p41
        %p316 = pneg %p65
        %p317 = pneg %p62
        %p318 = pneg %p86
        %p319 = pneg %p83
        %p320 = pneg %p107
        %p321 = pneg %p104
        %p322 = pneg %p128
        %p323 = pneg %p125
        %p324 = pneg %p149
        %p325 = pneg %p146
        %p326 = pneg %p170
        %p327 = pneg %p167
        %p328 = pneg %p191
        %p329 = pneg %p188
        %p330 = pneg %p212
        %p331 = pneg %p209
        %p332 = pneg %p238
        %p333 = pneg %p235
        %s334 = sand.u32 %s225, 1
        %s335 = scalar_lea.sflag [#allocation3], %s334
        %s336 = sand.u32 %s225, 1
        %s337 = smul.addr %s336, 32
        %s338 = scalar_lea.vmem [#allocation2], %s337
        %s339 = smul.u32 8, %s23
        %s340 = ssub.s32 25, %s339
        %p341 = scmp.lt.s32.totalorder %s340, 8
        %s342 = scalar_select %p341, %s340, 8
        %s343 = smul.u32 128, %s342
        %p344 = scmp.lt.s32.totalorder %s339, 24
        %s345 = scalar_select %p344, %s339, 24
        %s346 = smul.addr %s345, 8
        %s347 = scalar_lea.vmem %s0, %s346
        %s348 = smul.u32 8, %s23
        %s349 = ssub.s32 25, %s348
        %p350 = scmp.lt.s32.totalorder %s349, 8
        %s351 = scalar_select %p350, %s349, 8
        %s352 = smul.u32 128, %s351
        %s353 = smul.u32 8, %s23
        %s354 = ssub.s32 25, %s353
        %p355 = scmp.lt.s32.totalorder %s354, 8
        %s356 = scalar_select %p355, %s354, 8
        %s357 = smul.u32 64, %s356
        %v359 = vld [vmem:[%s347] sm:$0xff]
        %v360 = vld [vmem:[%s347 + $0x8] sm:$0xff]
        %v361 = vld [vmem:[%s347 + $0x10] sm:$0xff]
        %v362 = vld [vmem:[%s347 + $0x18] sm:$0xff]
        %v363 = vld [vmem:[%s347 + $0x20] sm:$0xff]
        %v364 = vld [vmem:[%s347 + $0x28] sm:$0xff]
        %v365 = vld [vmem:[%s347 + $0x30] sm:$0xff]
        %v366 = vld [vmem:[%s347 + $0x38] sm:$0xff]
        %v367 = vpack.c.bf16 %v360, %v359
        %v368 = vpack.c.bf16 %v362, %v361
        %v369 = vpack.c.bf16 %v364, %v363
        %v370 = vpack.c.bf16 %v366, %v365
        %v371 = vld [vmem:[%s1] sm:$0xf]
        %v372 = vld [vmem:[%s1 + $0x4] sm:$0xf]
        %v373 = vld [vmem:[%s1 + $0x8] sm:$0xf]
        %v374 = vld [vmem:[%s1 + $0xc] sm:$0xf]
        %v375 = vld [vmem:[%s2] sm:$0x1]
        %v377 = vlaneseq
        %v378 = vshrl.u32 %v377, 7
        %v379 = vsub.s32 0, %v378
        %v380 = vrot.slane %v375, %v379
        %v386 = vunpack.c.l.b16 %v371
        %v387 = vunpack.c.l.b16 %v372
        %v388 = vunpack.c.l.b16 %v373
        %v389 = vunpack.c.l.b16 %v374
        %v390 = vpack.c.b16 %v387, %v386
        %v391 = vpack.c.b16 %v389, %v388
        %vm394 = vcmask 261120
        %v396 = vsel %vm394, %v367, 0
        %v399 = vsel %vm394, %v368, 0
        %v402 = vsel %vm394, %v369, 0
        %v405 = vsel %vm394, %v370, 0
        %407 = vmatprep.subr.bf16.mxu0 0
        %408 = vmatpush1.bf16.msra.mxu0 %v390
        %409 = vmatprep.subr.bf16.mxu0 0
        %410 = vmatpush1.bf16.msra.mxu0 %v391
        %411 = vmatprep.subr.bf16.mxu0 0
        %412 = vmatpush1.bf16.msra.mxu0 0
        %413 = vmatprep.subr.bf16.mxu0 0
        %414 = vmatpush1.bf16.msra.mxu0 0
        %415 = vmatprep.subr.bf16.mxu0 0
        %416 = vmatpush1.bf16.msra.mxu0 0
        %417 = vmatprep.subr.bf16.mxu0 0
        %418 = vmatpush1.bf16.msra.mxu0 0
        %419 = vmatprep.subr.bf16.mxu0 0
        %420 = vmatpush1.bf16.msra.mxu0 0
        %421 = vmatprep.subr.bf16.mxu0 0
        %422 = vmatpush1.bf16.msra.mxu0 0
        %423 = vmatprep.subr.bf16.mxu0 0
        %424 = vmatpush1.bf16.msra.mxu0 0
        %425 = vmatprep.subr.bf16.mxu0 0
        %426 = vmatpush1.bf16.msra.mxu0 0
        %427 = vmatprep.subr.bf16.mxu0 0
        %428 = vmatpush1.bf16.msra.mxu0 0
        %429 = vmatprep.subr.bf16.mxu0 0
        %430 = vmatpush1.bf16.msra.mxu0 0
        %431 = vmatprep.subr.bf16.mxu0 0
        %432 = vmatpush1.bf16.msra.mxu0 0
        %433 = vmatprep.subr.bf16.mxu0 0
        %434 = vmatpush1.bf16.msra.mxu0 0
        %435 = vmatprep.subr.bf16.mxu0 0
        %436 = vmatpush1.bf16.msra.mxu0 0
        %437 = vmatprep.subr.bf16.mxu0 0
        %438 = vmatpush1.bf16.msra.mxu0 0
        %439 = vmatprep.mubr.bf16.mxu0 0
        %440 = vmatmul.mubr.bf16.gmra.mrb[0].mxu0 %v396
        %v441 = vpop.f32.mrb[0].mxu0
        %v442 = vadd.f32 %v380, %v441
        %v443 = vpop.f32.mrb[0].mxu0
        %v444 = vpop.f32.mrb[0].mxu0
        %v445 = vadd.f32 %v380, %v444
        %v446 = vpop.f32.mrb[0].mxu0
        %447 = vmatprep.mubr.bf16.mxu0 0
        %448 = vmatmul.mubr.bf16.gmra.mrb[0].mxu0 %v399
        %v449 = vpop.f32.mrb[0].mxu0
        %v450 = vadd.f32 %v380, %v449
        %v451 = vpop.f32.mrb[0].mxu0
        %v452 = vpop.f32.mrb[0].mxu0
        %v453 = vadd.f32 %v380, %v452
        %v454 = vpop.f32.mrb[0].mxu0
        %455 = vmatprep.mubr.bf16.mxu0 0
        %456 = vmatmul.mubr.bf16.gmra.mrb[0].mxu0 %v402
        %v457 = vpop.f32.mrb[0].mxu0
        %v458 = vadd.f32 %v380, %v457
        %v459 = vpop.f32.mrb[0].mxu0
        %v460 = vpop.f32.mrb[0].mxu0
        %v461 = vadd.f32 %v380, %v460
        %v462 = vpop.f32.mrb[0].mxu0
        %463 = vmatprep.mubr.bf16.mxu0 0
        %464 = vmatmul.mubr.bf16.gmra.mrb[0].mxu0 %v405
        %v465 = vpop.f32.mrb[0].mxu0
        %v466 = vadd.f32 %v380, %v465
        %v467 = vpop.f32.mrb[0].mxu0
        %v468 = vpop.f32.mrb[0].mxu0
        %v469 = vadd.f32 %v380, %v468
        %v470 = vpop.f32.mrb[0].mxu0
        %471 = vdwg.mxu0
        %v472 = vmax.f32 %v442, 0.0
        %v473 = vmax.f32 %v445, 0.0
        %v474 = vmax.f32 %v450, 0.0
        %v475 = vmax.f32 %v453, 0.0
        %v476 = vmax.f32 %v458, 0.0
        %v477 = vmax.f32 %v461, 0.0
        %v478 = vmax.f32 %v466, 0.0
        %v479 = vmax.f32 %v469, 0.0
        %v480 = vpack.c.bf16 %v473, %v472
        %v481 = vpack.c.bf16 %v475, %v474
        %v482 = vpack.c.bf16 %v477, %v476
        %v483 = vpack.c.bf16 %v479, %v478
        %v484 = vld [vmem:[%s3] sm:$0xf]
        %v485 = vld [vmem:[%s3 + $0x4] sm:$0xf]
        %v486 = vld [vmem:[%s3 + $0x8] sm:$0xf]
        %v487 = vld [vmem:[%s3 + $0xc] sm:$0xf]
        %v488 = vld [vmem:[%s3 + $0x10] sm:$0xf]
        %v489 = vld [vmem:[%s3 + $0x14] sm:$0xf]
        %v490 = vld [vmem:[%s3 + $0x18] sm:$0xf]
        %v491 = vld [vmem:[%s3 + $0x1c] sm:$0xf]
        %v492 = vld [vmem:[%s3 + $0x20] sm:$0xf]
        %v493 = vld [vmem:[%s3 + $0x24] sm:$0xf]
        %v494 = vld [vmem:[%s3 + $0x28] sm:$0xf]
        %v495 = vld [vmem:[%s3 + $0x2c] sm:$0xf]
        %v496 = vld [vmem:[%s3 + $0x30] sm:$0xf]
        %v497 = vld [vmem:[%s3 + $0x34] sm:$0xf]
        %v498 = vld [vmem:[%s3 + $0x38] sm:$0xf]
        %v499 = vld [vmem:[%s3 + $0x3c] sm:$0xf]
        %v500 = vld [vmem:[%s4] sm:$0x1]
        %v502 = vlaneseq
        %v503 = vshrl.u32 %v502, 7
        %v504 = vsub.s32 0, %v503
        %v505 = vrot.slane %v500, %v504
        %v523 = vunpack.c.l.b16 %v484
        %v524 = vunpack.c.l.b16 %v485
        %v525 = vunpack.c.l.b16 %v486
        %v526 = vunpack.c.l.b16 %v487
        %v527 = vunpack.c.l.b16 %v488
        %v528 = vunpack.c.l.b16 %v489
        %v529 = vunpack.c.l.b16 %v490
        %v530 = vunpack.c.l.b16 %v491
        %v531 = vunpack.c.l.b16 %v492
        %v532 = vunpack.c.l.b16 %v493
        %v533 = vunpack.c.l.b16 %v494
        %v534 = vunpack.c.l.b16 %v495
        %v535 = vunpack.c.l.b16 %v496
        %v536 = vunpack.c.l.b16 %v497
        %v537 = vunpack.c.l.b16 %v498
        %v538 = vunpack.c.l.b16 %v499
        %v539 = vpack.c.b16 %v524, %v523
        %v540 = vpack.c.b16 %v526, %v525
        %v541 = vpack.c.b16 %v528, %v527
        %v542 = vpack.c.b16 %v530, %v529
        %v543 = vpack.c.b16 %v532, %v531
        %v544 = vpack.c.b16 %v534, %v533
        %v545 = vpack.c.b16 %v536, %v535
        %v546 = vpack.c.b16 %v538, %v537
        %555 = vmatprep.subr.bf16.mxu0 0
        %556 = vmatpush1.bf16.msra.mxu0 %v539
        %557 = vmatprep.subr.bf16.mxu0 0
        %558 = vmatpush1.bf16.msra.mxu0 %v540
        %559 = vmatprep.subr.bf16.mxu0 0
        %560 = vmatpush1.bf16.msra.mxu0 %v541
        %561 = vmatprep.subr.bf16.mxu0 0
        %562 = vmatpush1.bf16.msra.mxu0 %v542
        %563 = vmatprep.subr.bf16.mxu0 0
        %564 = vmatpush1.bf16.msra.mxu0 %v543
        %565 = vmatprep.subr.bf16.mxu0 0
        %566 = vmatpush1.bf16.msra.mxu0 %v544
        %567 = vmatprep.subr.bf16.mxu0 0
        %568 = vmatpush1.bf16.msra.mxu0 %v545
        %569 = vmatprep.subr.bf16.mxu0 0
        %570 = vmatpush1.bf16.msra.mxu0 %v546
        %571 = vmatprep.subr.bf16.mxu0 0
        %572 = vmatpush1.bf16.msra.mxu0 0
        %573 = vmatprep.subr.bf16.mxu0 0
        %574 = vmatpush1.bf16.msra.mxu0 0
        %575 = vmatprep.subr.bf16.mxu0 0
        %576 = vmatpush1.bf16.msra.mxu0 0
        %577 = vmatprep.subr.bf16.mxu0 0
        %578 = vmatpush1.bf16.msra.mxu0 0
        %579 = vmatprep.subr.bf16.mxu0 0
        %580 = vmatpush1.bf16.msra.mxu0 0
        %581 = vmatprep.subr.bf16.mxu0 0
        %582 = vmatpush1.bf16.msra.mxu0 0
        %583 = vmatprep.subr.bf16.mxu0 0
        %584 = vmatpush1.bf16.msra.mxu0 0
        %585 = vmatprep.subr.bf16.mxu0 0
        %586 = vmatpush1.bf16.msra.mxu0 0
        %587 = vmatprep.mubr.bf16.mxu0 0
        %588 = vmatmul.mubr.bf16.gmra.mrb[0].mxu0 %v480
        %v589 = vpop.f32.mrb[0].mxu0
        %v590 = vadd.f32 %v505, %v589
        %v591 = vpop.f32.mrb[0].mxu0
        %v592 = vpop.f32.mrb[0].mxu0
        %v593 = vadd.f32 %v505, %v592
        %v594 = vpop.f32.mrb[0].mxu0
        %595 = vmatprep.mubr.bf16.mxu0 0
        %596 = vmatmul.mubr.bf16.gmra.mrb[0].mxu0 %v481
        %v597 = vpop.f32.mrb[0].mxu0
        %v598 = vadd.f32 %v505, %v597
        %v599 = vpop.f32.mrb[0].mxu0
        %v600 = vpop.f32.mrb[0].mxu0
        %v601 = vadd.f32 %v505, %v600
        %v602 = vpop.f32.mrb[0].mxu0
        %603 = vmatprep.mubr.bf16.mxu0 0
        %604 = vmatmul.mubr.bf16.gmra.mrb[0].mxu0 %v482
        %v605 = vpop.f32.mrb[0].mxu0
        %v606 = vadd.f32 %v505, %v605
        %v607 = vpop.f32.mrb[0].mxu0
        %v608 = vpop.f32.mrb[0].mxu0
        %v609 = vadd.f32 %v505, %v608
        %v610 = vpop.f32.mrb[0].mxu0
        %611 = vmatprep.mubr.bf16.mxu0 0
        %612 = vmatmul.mubr.bf16.gmra.mrb[0].mxu0 %v483
        %v613 = vpop.f32.mrb[0].mxu0
        %v614 = vadd.f32 %v505, %v613
        %v615 = vpop.f32.mrb[0].mxu0
        %v616 = vpop.f32.mrb[0].mxu0
        %v617 = vadd.f32 %v505, %v616
        %v618 = vpop.f32.mrb[0].mxu0
        %619 = vdwg.mxu0
        %v620 = vmax.f32 %v590, 0.0
        %v621 = vmax.f32 %v593, 0.0
        %v622 = vmax.f32 %v598, 0.0
        %v623 = vmax.f32 %v601, 0.0
        %v624 = vmax.f32 %v606, 0.0
        %v625 = vmax.f32 %v609, 0.0
        %v626 = vmax.f32 %v614, 0.0
        %v627 = vmax.f32 %v617, 0.0
        %v628 = vpack.c.bf16 %v621, %v620
        %v629 = vpack.c.bf16 %v623, %v622
        %v630 = vpack.c.bf16 %v625, %v624
        %v631 = vpack.c.bf16 %v627, %v626
        %v632 = vld [vmem:[%s5] sm:$0xf]
        %v633 = vld [vmem:[%s5 + $0x4] sm:$0xf]
        %v634 = vld [vmem:[%s5 + $0x8] sm:$0xf]
        %v635 = vld [vmem:[%s5 + $0xc] sm:$0xf]
        %v636 = vld [vmem:[%s5 + $0x10] sm:$0xf]
        %v637 = vld [vmem:[%s5 + $0x14] sm:$0xf]
        %v638 = vld [vmem:[%s5 + $0x18] sm:$0xf]
        %v639 = vld [vmem:[%s5 + $0x1c] sm:$0xf]
        %v640 = vld [vmem:[%s5 + $0x20] sm:$0xf]
        %v641 = vld [vmem:[%s5 + $0x24] sm:$0xf]
        %v642 = vld [vmem:[%s5 + $0x28] sm:$0xf]
        %v643 = vld [vmem:[%s5 + $0x2c] sm:$0xf]
        %v644 = vld [vmem:[%s5 + $0x30] sm:$0xf]
        %v645 = vld [vmem:[%s5 + $0x34] sm:$0xf]
        %v646 = vld [vmem:[%s5 + $0x38] sm:$0xf]
        %v647 = vld [vmem:[%s5 + $0x3c] sm:$0xf]
        %v648 = vld [vmem:[%s6] sm:$0x1]
        %v650 = vlaneseq
        %v651 = vshrl.u32 %v650, 7
        %v652 = vsub.s32 0, %v651
        %v653 = vrot.slane %v648, %v652
        %v671 = vunpack.c.l.b16 %v632
        %v672 = vunpack.c.l.b16 %v633
        %v673 = vunpack.c.l.b16 %v634
        %v674 = vunpack.c.l.b16 %v635
        %v675 = vunpack.c.l.b16 %v636
        %v676 = vunpack.c.l.b16 %v637
        %v677 = vunpack.c.l.b16 %v638
        %v678 = vunpack.c.l.b16 %v639
        %v679 = vunpack.c.l.b16 %v640
        %v680 = vunpack.c.l.b16 %v641
        %v681 = vunpack.c.l.b16 %v642
        %v682 = vunpack.c.l.b16 %v643
        %v683 = vunpack.c.l.b16 %v644
        %v684 = vunpack.c.l.b16 %v645
        %v685 = vunpack.c.l.b16 %v646
        %v686 = vunpack.c.l.b16 %v647
        %v687 = vpack.c.b16 %v672, %v671
        %v688 = vpack.c.b16 %v674, %v673
        %v689 = vpack.c.b16 %v676, %v675
        %v690 = vpack.c.b16 %v678, %v677
        %v691 = vpack.c.b16 %v680, %v679
        %v692 = vpack.c.b16 %v682, %v681
        %v693 = vpack.c.b16 %v684, %v683
        %v694 = vpack.c.b16 %v686, %v685
        %703 = vmatprep.subr.bf16.mxu0 0
        %704 = vmatpush1.bf16.msra.mxu0 %v687
        %705 = vmatprep.subr.bf16.mxu0 0
        %706 = vmatpush1.bf16.msra.mxu0 %v688
        %707 = vmatprep.subr.bf16.mxu0 0
        %708 = vmatpush1.bf16.msra.mxu0 %v689
        %709 = vmatprep.subr.bf16.mxu0 0
        %710 = vmatpush1.bf16.msra.mxu0 %v690
        %711 = vmatprep.subr.bf16.mxu0 0
        %712 = vmatpush1.bf16.msra.mxu0 %v691
        %713 = vmatprep.subr.bf16.mxu0 0
        %714 = vmatpush1.bf16.msra.mxu0 %v692
        %715 = vmatprep.subr.bf16.mxu0 0
        %716 = vmatpush1.bf16.msra.mxu0 %v693
        %717 = vmatprep.subr.bf16.mxu0 0
        %718 = vmatpush1.bf16.msra.mxu0 %v694
        %719 = vmatprep.subr.bf16.mxu0 0
        %720 = vmatpush1.bf16.msra.mxu0 0
        %721 = vmatprep.subr.bf16.mxu0 0
        %722 = vmatpush1.bf16.msra.mxu0 0
        %723 = vmatprep.subr.bf16.mxu0 0
        %724 = vmatpush1.bf16.msra.mxu0 0
        %725 = vmatprep.subr.bf16.mxu0 0
        %726 = vmatpush1.bf16.msra.mxu0 0
        %727 = vmatprep.subr.bf16.mxu0 0
        %728 = vmatpush1.bf16.msra.mxu0 0
        %729 = vmatprep.subr.bf16.mxu0 0
        %730 = vmatpush1.bf16.msra.mxu0 0
        %731 = vmatprep.subr.bf16.mxu0 0
        %732 = vmatpush1.bf16.msra.mxu0 0
        %733 = vmatprep.subr.bf16.mxu0 0
        %734 = vmatpush1.bf16.msra.mxu0 0
        %735 = vmatprep.mubr.bf16.mxu0 0
        %736 = vmatmul.mubr.bf16.gmra.mrb[0].mxu0 %v628
        %v737 = vpop.f32.mrb[0].mxu0
        %v738 = vadd.f32 %v653, %v737
        %v739 = vpop.f32.mrb[0].mxu0
        %v740 = vpop.f32.mrb[0].mxu0
        %v741 = vadd.f32 %v653, %v740
        %v742 = vpop.f32.mrb[0].mxu0
        %743 = vmatprep.mubr.bf16.mxu0 0
        %744 = vmatmul.mubr.bf16.gmra.mrb[0].mxu0 %v629
        %v745 = vpop.f32.mrb[0].mxu0
        %v746 = vadd.f32 %v653, %v745
        %v747 = vpop.f32.mrb[0].mxu0
        %v748 = vpop.f32.mrb[0].mxu0
        %v749 = vadd.f32 %v653, %v748
        %v750 = vpop.f32.mrb[0].mxu0
        %751 = vmatprep.mubr.bf16.mxu0 0
        %752 = vmatmul.mubr.bf16.gmra.mrb[0].mxu0 %v630
        %v753 = vpop.f32.mrb[0].mxu0
        %v754 = vadd.f32 %v653, %v753
        %v755 = vpop.f32.mrb[0].mxu0
        %v756 = vpop.f32.mrb[0].mxu0
        %v757 = vadd.f32 %v653, %v756
        %v758 = vpop.f32.mrb[0].mxu0
        %759 = vmatprep.mubr.bf16.mxu0 0
        %760 = vmatmul.mubr.bf16.gmra.mrb[0].mxu0 %v631
        %v761 = vpop.f32.mrb[0].mxu0
        %v762 = vadd.f32 %v653, %v761
        %v763 = vpop.f32.mrb[0].mxu0
        %v764 = vpop.f32.mrb[0].mxu0
        %v765 = vadd.f32 %v653, %v764
        %v766 = vpop.f32.mrb[0].mxu0
        %767 = vdwg.mxu0
        %v768 = vmax.f32 %v738, 0.0
        %v769 = vmax.f32 %v741, 0.0
        %v770 = vmax.f32 %v746, 0.0
        %v771 = vmax.f32 %v749, 0.0
        %v772 = vmax.f32 %v754, 0.0
        %v773 = vmax.f32 %v757, 0.0
        %v774 = vmax.f32 %v762, 0.0
        %v775 = vmax.f32 %v765, 0.0
        %v776 = vpack.c.bf16 %v769, %v768
        %v777 = vpack.c.bf16 %v771, %v770
        %v778 = vpack.c.bf16 %v773, %v772
        %v779 = vpack.c.bf16 %v775, %v774
        %v780 = vld [vmem:[%s7] sm:$0xf]
        %v781 = vld [vmem:[%s7 + $0x4] sm:$0xf]
        %v782 = vld [vmem:[%s7 + $0x8] sm:$0xf]
        %v783 = vld [vmem:[%s7 + $0xc] sm:$0xf]
        %v784 = vld [vmem:[%s7 + $0x10] sm:$0xf]
        %v785 = vld [vmem:[%s7 + $0x14] sm:$0xf]
        %v786 = vld [vmem:[%s7 + $0x18] sm:$0xf]
        %v787 = vld [vmem:[%s7 + $0x1c] sm:$0xf]
        %v788 = vld [vmem:[%s7 + $0x20] sm:$0xf]
        %v789 = vld [vmem:[%s7 + $0x24] sm:$0xf]
        %v790 = vld [vmem:[%s7 + $0x28] sm:$0xf]
        %v791 = vld [vmem:[%s7 + $0x2c] sm:$0xf]
        %v792 = vld [vmem:[%s7 + $0x30] sm:$0xf]
        %v793 = vld [vmem:[%s7 + $0x34] sm:$0xf]
        %v794 = vld [vmem:[%s7 + $0x38] sm:$0xf]
        %v795 = vld [vmem:[%s7 + $0x3c] sm:$0xf]
        %v796 = vld [vmem:[%s8] sm:$0x1]
        %v798 = vlaneseq
        %v799 = vshrl.u32 %v798, 7
        %v800 = vsub.s32 0, %v799
        %v801 = vrot.slane %v796, %v800
        %v819 = vunpack.c.l.b16 %v780
        %v820 = vunpack.c.l.b16 %v781
        %v821 = vunpack.c.l.b16 %v782
        %v822 = vunpack.c.l.b16 %v783
        %v823 = vunpack.c.l.b16 %v784
        %v824 = vunpack.c.l.b16 %v785
        %v825 = vunpack.c.l.b16 %v786
        %v826 = vunpack.c.l.b16 %v787
        %v827 = vunpack.c.l.b16 %v788
        %v828 = vunpack.c.l.b16 %v789
        %v829 = vunpack.c.l.b16 %v790
        %v830 = vunpack.c.l.b16 %v791
        %v831 = vunpack.c.l.b16 %v792
        %v832 = vunpack.c.l.b16 %v793
        %v833 = vunpack.c.l.b16 %v794
        %v834 = vunpack.c.l.b16 %v795
        %v835 = vpack.c.b16 %v820, %v819
        %v836 = vpack.c.b16 %v822, %v821
        %v837 = vpack.c.b16 %v824, %v823
        %v838 = vpack.c.b16 %v826, %v825
        %v839 = vpack.c.b16 %v828, %v827
        %v840 = vpack.c.b16 %v830, %v829
        %v841 = vpack.c.b16 %v832, %v831
        %v842 = vpack.c.b16 %v834, %v833
        %851 = vmatprep.subr.bf16.mxu0 0
        %852 = vmatpush1.bf16.msra.mxu0 %v835
        %853 = vmatprep.subr.bf16.mxu0 0
        %854 = vmatpush1.bf16.msra.mxu0 %v836
        %855 = vmatprep.subr.bf16.mxu0 0
        %856 = vmatpush1.bf16.msra.mxu0 %v837
        %857 = vmatprep.subr.bf16.mxu0 0
        %858 = vmatpush1.bf16.msra.mxu0 %v838
        %859 = vmatprep.subr.bf16.mxu0 0
        %860 = vmatpush1.bf16.msra.mxu0 %v839
        %861 = vmatprep.subr.bf16.mxu0 0
        %862 = vmatpush1.bf16.msra.mxu0 %v840
        %863 = vmatprep.subr.bf16.mxu0 0
        %864 = vmatpush1.bf16.msra.mxu0 %v841
        %865 = vmatprep.subr.bf16.mxu0 0
        %866 = vmatpush1.bf16.msra.mxu0 %v842
        %867 = vmatprep.subr.bf16.mxu0 0
        %868 = vmatpush1.bf16.msra.mxu0 0
        %869 = vmatprep.subr.bf16.mxu0 0
        %870 = vmatpush1.bf16.msra.mxu0 0
        %871 = vmatprep.subr.bf16.mxu0 0
        %872 = vmatpush1.bf16.msra.mxu0 0
        %873 = vmatprep.subr.bf16.mxu0 0
        %874 = vmatpush1.bf16.msra.mxu0 0
        %875 = vmatprep.subr.bf16.mxu0 0
        %876 = vmatpush1.bf16.msra.mxu0 0
        %877 = vmatprep.subr.bf16.mxu0 0
        %878 = vmatpush1.bf16.msra.mxu0 0
        %879 = vmatprep.subr.bf16.mxu0 0
        %880 = vmatpush1.bf16.msra.mxu0 0
        %881 = vmatprep.subr.bf16.mxu0 0
        %882 = vmatpush1.bf16.msra.mxu0 0
        %883 = vmatprep.mubr.bf16.mxu0 0
        %884 = vmatmul.mubr.bf16.gmra.mrb[0].mxu0 %v776
        %v885 = vpop.f32.mrb[0].mxu0
        %v886 = vadd.f32 %v801, %v885
        %v887 = vpop.f32.mrb[0].mxu0
        %v888 = vpop.f32.mrb[0].mxu0
        %v889 = vadd.f32 %v801, %v888
        %v890 = vpop.f32.mrb[0].mxu0
        %891 = vmatprep.mubr.bf16.mxu0 0
        %892 = vmatmul.mubr.bf16.gmra.mrb[0].mxu0 %v777
        %v893 = vpop.f32.mrb[0].mxu0
        %v894 = vadd.f32 %v801, %v893
        %v895 = vpop.f32.mrb[0].mxu0
        %v896 = vpop.f32.mrb[0].mxu0
        %v897 = vadd.f32 %v801, %v896
        %v898 = vpop.f32.mrb[0].mxu0
        %899 = vmatprep.mubr.bf16.mxu0 0
        %900 = vmatmul.mubr.bf16.gmra.mrb[0].mxu0 %v778
        %v901 = vpop.f32.mrb[0].mxu0
        %v902 = vadd.f32 %v801, %v901
        %v903 = vpop.f32.mrb[0].mxu0
        %v904 = vpop.f32.mrb[0].mxu0
        %v905 = vadd.f32 %v801, %v904
        %v906 = vpop.f32.mrb[0].mxu0
        %907 = vmatprep.mubr.bf16.mxu0 0
        %908 = vmatmul.mubr.bf16.gmra.mrb[0].mxu0 %v779
        %v909 = vpop.f32.mrb[0].mxu0
        %v910 = vadd.f32 %v801, %v909
        %v911 = vpop.f32.mrb[0].mxu0
        %v912 = vpop.f32.mrb[0].mxu0
        %v913 = vadd.f32 %v801, %v912
        %v914 = vpop.f32.mrb[0].mxu0
        %915 = vdwg.mxu0
        %v916 = vsub.f32 0.0, %v886
        %v917 = vsub.f32 0.0, %v889
        %v918 = vsub.f32 0.0, %v894
        %v919 = vsub.f32 0.0, %v897
        %v920 = vsub.f32 0.0, %v902
        %v921 = vsub.f32 0.0, %v905
        %v922 = vsub.f32 0.0, %v910
        %v923 = vsub.f32 0.0, %v913
        %v924 = vmul.f32 %v916, 1.442695
        %v925 = vpow.pop %v924
        %v926 = vmul.f32 %v917, 1.442695
        %v927 = vpow.pop %v926
        %v928 = vmul.f32 %v918, 1.442695
        %v929 = vpow.pop %v928
        %v930 = vmul.f32 %v919, 1.442695
        %v931 = vpow.pop %v930
        %v932 = vmul.f32 %v920, 1.442695
        %v933 = vpow.pop %v932
        %v934 = vmul.f32 %v921, 1.442695
        %v935 = vpow.pop %v934
        %v936 = vmul.f32 %v922, 1.442695
        %v937 = vpow.pop %v936
        %v938 = vmul.f32 %v923, 1.442695
        %v939 = vpow.pop %v938
        %v940 = vadd.f32 %v925, 1.0
        %v941 = vadd.f32 %v927, 1.0
        %v942 = vadd.f32 %v929, 1.0
        %v943 = vadd.f32 %v931, 1.0
        %v944 = vadd.f32 %v933, 1.0
        %v945 = vadd.f32 %v935, 1.0
        %v946 = vadd.f32 %v937, 1.0
        %v947 = vadd.f32 %v939, 1.0
        %v948 = vrcp.pop %v940
        %v949 = vrcp.pop %v941
        %v950 = vrcp.pop %v942
        %v951 = vrcp.pop %v943
        %v952 = vrcp.pop %v944
        %v953 = vrcp.pop %v945
        %v954 = vrcp.pop %v946
        %v955 = vrcp.pop %v947
        %v956 = vpack.c.bf16 %v949, %v948
        %v957 = vpack.c.bf16 %v951, %v950
        %v958 = vpack.c.bf16 %v953, %v952
        %v959 = vpack.c.bf16 %v955, %v954
        %v964 = vunpack.c.l.b16 %v956
        %v965 = vunpack.c.h.b16 %v956
        %v966 = vunpack.c.l.b16 %v957
        %v967 = vunpack.c.h.b16 %v957
        %v968 = vunpack.c.l.b16 %v958
        %v969 = vunpack.c.h.b16 %v958
        %v970 = vunpack.c.l.b16 %v959
        %v971 = vunpack.c.h.b16 %v959
        %v972 = vpack.c.b16 %v964, %v964
        %v973 = vpack.c.b16 %v965, %v965
        %v974 = vpack.c.b16 %v966, %v966
        %v975 = vpack.c.b16 %v967, %v967
        %v976 = vpack.c.b16 %v968, %v968
        %v977 = vpack.c.b16 %v969, %v969
        %v978 = vpack.c.b16 %v970, %v970
        %v979 = vpack.c.b16 %v971, %v971
        %988 = vst [vmem:[%s338] sm:$0xf] %v972
        %989 = vst [vmem:[%s338 + $0x4] sm:$0xf] %v973
        %990 = vst [vmem:[%s338 + $0x8] sm:$0xf] %v974
        %991 = vst [vmem:[%s338 + $0xc] sm:$0xf] %v975
        %992 = vst [vmem:[%s338 + $0x10] sm:$0xf] %v976
        %993 = vst [vmem:[%s338 + $0x14] sm:$0xf] %v977
        %994 = vst [vmem:[%s338 + $0x18] sm:$0xf] %v978
        %995 = vst [vmem:[%s338 + $0x1c] sm:$0xf] %v979
        %s996 = sand.u32 %s225, 1
        %s997 = scalar_lea.sflag [#allocation3], %s996
        %s998 = sand.u32 %s225, 1
        %s999 = smul.addr %s998, 32
        %s1000 = scalar_lea.vmem [#allocation2], %s999
        // Predicated region
        $region57: #{tpu_custom_call.1} parent=55 // pred_check
          %p1001 = pneg %p235
        $region58: #{tpu_custom_call.1} parent=55 // pred_check_branch
          %1003 = sbr.rel (%p1001) target = $region60
        $region59: #{tpu_custom_call.1} parent=55 // pred_region
          %s1004 = smul.u32 8, %s23
          %s1005 = ssub.s32 25, %s1004
          %p1006 = scmp.lt.s32.totalorder %s1005, 8
          %s1007 = scalar_select %p1006, %s1005, 8
          %s1008 = smul.u32 64, %s1007
          %s1010 = ssub.s32 512, %s1008
          %1011 = vsyncadd %s997, %s1010
          %p1012 = scmp.ne.s32.totalorder 0, %s1008
          %s1013 = smul.addr %s1004, 64
          %s1014 = scalar_lea.hbm %s9, %s1013
          %s1015 = smul.u32 4, %s1007
          %s1016 = sshll.u32 %s1000, 4
          %s1017 = int_to_ptr.vmem [resolvable:$true] %s1016
          %s1018 = sshll.u32 %s1015, 4
          %1022 = dma.vmem_to_hbm [thread:$0]  (%p1012), %s1017, %s1018, %s1014, %s997, 64, 64, 4
        $region60: #{tpu_custom_call.1} parent=55 // pred_fallthru
          _
      $region56: #{tpu_custom_call.1} parent=5 // pred_fallthru
        _
      %p1023 = scmp.le.s32.totalorder 2, %s18
      // Predicated region
      $region61: #{tpu_custom_call.1} parent=5 // pred_check
        %p1024 = pneg %p1023
      $region62: #{tpu_custom_call.1} parent=5 // pred_check_branch
        %1026 = sbr.rel (%p1024) target = $region64
      $region63: #{tpu_custom_call.1} parent=5 // pred_region
        %s1027 = ssub.s32 %s18, 2
        // Predicated region
        $region65: #{tpu_custom_call.1} parent=63 // pred_check
          %p1028 = pneg %p241
        $region66: #{tpu_custom_call.1} parent=63 // pred_check_branch
          %1030 = sbr.rel (%p1028) target = $region68
        $region67: #{tpu_custom_call.1} parent=63 // pred_region
          %s1031 = sand.u32 %s226, 1
          %s1032 = scalar_lea.sflag [#allocation3], %s1031
          %s1033 = sand.u32 %s226, 1
          %s1034 = smul.addr %s1033, 32
          %s1035 = scalar_lea.vmem [#allocation2], %s1034
          %1036 = dma.done %s1032, 512
        $region68: #{tpu_custom_call.1} parent=63 // pred_fallthru
          _
      $region64: #{tpu_custom_call.1} parent=5 // pred_fallthru
        _
    $region6: #{tpu_custom_call.1} parent=1 // loop_footer
      %s22 = sadd.s32 1, %s18
    $region7: #{tpu_custom_call.1} parent=1 // loop_footer_branch
      %17 = sbr.rel target = $region3
    $region8: #{tpu_custom_call.1} parent=1 // loop_exit
      _
    %1037 = vsyncpa [#allocation3], 1
    %s1038 = scalar_lea.sflag [#allocation3], 1
    %1039 = vsyncpa %s1038, 1

</llo_original>
